<compile_context>
chip_gen: v7x
topology: tpu7x:2x2x1
jax: 0.10.0
libtpu: 0.0.40
codegen_flags: <defaults>
</compile_context>

<pallas_src>
import functools

import jax
import jax.numpy as jnp
from jax.experimental import pallas as pl
from jax.experimental.pallas import tpu as pltpu


# ----------------------------------------------------------------------------
# Fused WeightDrop + LSTM kernel
# ----------------------------------------------------------------------------
def _wd_lstm_kernel(x_ref, wih_t_ref, whh_raw_t_ref, bits_ref, b_ref,
                    out_ref, hfin_ref, cfin_ref,
                    h_scr, c_scr, whh_scr, z_scr, *, p):
    chunk = pl.program_id(0)
    Tc, B, I = x_ref.shape
    H = h_scr.shape[1]

    # ---- chunk 0: init carries + fused recurrent-weight dropout ------------
    @pl.when(chunk == 0)
    def _init():
        h_scr[...] = jnp.zeros_like(h_scr)
        c_scr[...] = jnp.zeros_like(c_scr)
        if p > 0.0:
            # keep iff bits >= p * 2^32  (keep prob = 1 - p), scale by 1/(1-p)
            thresh = jnp.uint32(min(int(p * 4294967296.0), 4294967295))
            keep = (bits_ref[...] >= thresh).astype(jnp.float32)
            scale = jnp.float32(1.0 / (1.0 - p))
            whh_scr[...] = (whh_raw_t_ref[...].astype(jnp.float32)
                            * keep * scale).astype(whh_scr.dtype)
        else:
            whh_scr[...] = whh_raw_t_ref[...].astype(whh_scr.dtype)

    # ---- batched input projection for the whole chunk: one MXU matmul ------
    # (Tc*B, I) x (I, 4H)  -- no time dependency, so it is hoisted out of the
    # recurrence and done with M = Tc*B rows instead of Tc tiny B-row matmuls.
    x_chunk = x_ref[...].reshape(Tc * B, I).astype(jnp.bfloat16)
    z_scr[...] = (jnp.dot(x_chunk, wih_t_ref[...],
                          preferred_element_type=jnp.float32)
                  .reshape(Tc, B, 4 * H) + b_ref[...])

    # ---- serial recurrence over the chunk (only h @ W_hh^T per step) -------
    whh_bf = whh_scr[...]                      # dropped W_hh^T, (H, 4H) bf16

    def step(t, carry):
        h, c = carry                           # f32 state
        z = z_scr[t] + jnp.dot(h.astype(jnp.bfloat16), whh_bf,
                               preferred_element_type=jnp.float32)
        i_g = jax.nn.sigmoid(z[:, 0 * H:1 * H])
        f_g = jax.nn.sigmoid(z[:, 1 * H:2 * H])
        g_g = jnp.tanh(z[:, 2 * H:3 * H])
        o_g = jax.nn.sigmoid(z[:, 3 * H:4 * H])
        c_new = f_g * c + i_g * g_g
        h_new = o_g * jnp.tanh(c_new)
        out_ref[t] = h_new.astype(out_ref.dtype)
        return h_new, c_new

    h_f, c_f = jax.lax.fori_loop(0, Tc, step, (h_scr[...], c_scr[...]),
                                 unroll=True)
    h_scr[...] = h_f
    c_scr[...] = c_f

    # ---- emit (h_n, c_n) once, on the last chunk ----------------------------
    @pl.when(chunk == pl.num_programs(0) - 1)
    def _final():
        hfin_ref[...] = h_f.astype(hfin_ref.dtype)
        cfin_ref[...] = c_f.astype(cfin_ref.dtype)


def _dropout_bits(key, H):
    """uint32 random bits for the (H, 4H) recurrent-weight dropout mask."""
    return jax.random.bits(key, (H, 4 * H), dtype=jnp.uint32)


def weight_drop_lstm_forward(x, w_ih, w_hh_raw, b_ih, b_hh, *, p=0.5,
                             training=True, dropout_key=None, time_chunk=4):
    """x: (T, B, I) -> (out (T, B, H), (h_n (B, H), c_n (B, H)))."""
    T, B, I = x.shape
    H = w_hh_raw.shape[0] // 4

    # time-chunk size that divides T (amortizes per-grid-step overhead)
    Tc = max(1, min(time_chunk, T))
    while T % Tc:
        Tc -= 1
    n_chunks = T // Tc

    # host-side layout prep (glue): transpose weights, bf16 for MXU operands
    wih_t = jnp.transpose(w_ih).astype(jnp.bfloat16)          # (I, 4H)
    whh_raw_t = jnp.transpose(w_hh_raw).astype(jnp.bfloat16)  # (H, 4H)
    b = (b_ih + b_hh).astype(jnp.float32).reshape(1, 4 * H)   # (1, 4H)

    # TODO(synk): pltpu.prng_seed/prng_random_bits would generate the mask bits
    # on-chip, but they have no CPU/interpret lowering, so bits come in as input.
    p_eff = float(p) if training else 0.0
    if dropout_key is None:
        dropout_key = jax.random.PRNGKey(0)
    bits = _dropout_bits(dropout_key, H)

    out, h_n, c_n = pl.pallas_call(
        functools.partial(_wd_lstm_kernel, p=p_eff),
        out_shape=(
            jax.ShapeDtypeStruct((T, B, H), x.dtype),
            jax.ShapeDtypeStruct((B, H), x.dtype),
            jax.ShapeDtypeStruct((B, H), x.dtype),
        ),
        grid=(n_chunks,),
        in_specs=[
            pl.BlockSpec((Tc, B, I), lambda c: (c, 0, 0)),   # x chunk
            pl.BlockSpec((I, 4 * H), lambda c: (0, 0)),      # W_ih^T   (resident)
            pl.BlockSpec((H, 4 * H), lambda c: (0, 0)),      # W_hh^T raw (resident)
            pl.BlockSpec((H, 4 * H), lambda c: (0, 0)),      # dropout bits (resident)
            pl.BlockSpec((1, 4 * H), lambda c: (0, 0)),      # fused bias (resident)
        ],
        out_specs=(
            pl.BlockSpec((Tc, B, H), lambda c: (c, 0, 0)),   # full output
            pl.BlockSpec((B, H), lambda c: (0, 0)),          # h_n (resident)
            pl.BlockSpec((B, H), lambda c: (0, 0)),          # c_n (resident)
        ),
        scratch_shapes=[
            pltpu.VMEM((B, H), jnp.float32),              # h carry
            pltpu.VMEM((B, H), jnp.float32),              # c carry
            pltpu.VMEM((H, 4 * H), jnp.bfloat16),         # dropped W_hh^T
            pltpu.VMEM((Tc, B, 4 * H), jnp.float32),      # chunk input projection
        ],
        compiler_params=pltpu.CompilerParams(
            dimension_semantics=("arbitrary",),   # time recurrence is serial
            vmem_limit_bytes=32 * 1024 * 1024,
        ),
    )(x, wih_t, whh_raw_t, bits, b)

    return out, (h_n, c_n)


# ----------------------------------------------------------------------------
# WeightDrop(nn.LSTM(I, H), p) module equivalent
# ----------------------------------------------------------------------------
class WeightDropLSTM:
    """JAX/Pallas equivalent of WeightDrop(nn.LSTM(input_size, hidden_size), p)."""

    def __init__(self, input_size, hidden_size, p=0.5, key=None):
        self.p = p
        self.input_size = input_size
        self.hidden_size = hidden_size
        self.training = True
        key = jax.random.PRNGKey(0) if key is None else key
        k = jax.random.split(key, 4)
        bound = 1.0 / float(jnp.sqrt(hidden_size))
        self.w_ih = jax.random.uniform(
            k[0], (4 * hidden_size, input_size), jnp.float32, -bound, bound)
        # stored as "weight_hh_l0_raw" in the PyTorch module
        self.w_hh_raw = jax.random.uniform(
            k[1], (4 * hidden_size, hidden_size), jnp.float32, -bound, bound)
        self.b_ih = jax.random.uniform(
            k[2], (4 * hidden_size,), jnp.float32, -bound, bound)
        self.b_hh = jax.random.uniform(
            k[3], (4 * hidden_size,), jnp.float32, -bound, bound)

    def forward(self, x, seed=0):
        # _setweights() + module.forward() fused into one pallas_call
        return weight_drop_lstm_forward(
            x, self.w_ih, self.w_hh_raw, self.b_ih, self.b_hh,
            p=self.p, training=self.training,
            dropout_key=jax.random.PRNGKey(seed), time_chunk=4)


# ----------------------------------------------------------------------------
# Pure-JAX reference (for correctness check against the kernel)
# ----------------------------------------------------------------------------
def _reference_forward(x, w_ih, w_hh_raw, b_ih, b_hh, bits, p):
    T, B, I = x.shape
    H = w_hh_raw.shape[0] // 4
    thresh = jnp.uint32(min(int(p * 4294967296.0), 4294967295))
    keep = (bits >= thresh).astype(jnp.float32)               # mask on W_hh^T
    w_hh_t = jnp.transpose(w_hh_raw) * keep * (1.0 / (1.0 - p))
    w_ih_t = jnp.transpose(w_ih)
    b = (b_ih + b_hh).reshape(1, 4 * H)
    h = jnp.zeros((B, H), jnp.float32)
    c = jnp.zeros((B, H), jnp.float32)
    outs = []
    for t in range(T):
        z = x[t] @ w_ih_t + h @ w_hh_t + b
        i_g = jax.nn.sigmoid(z[:, 0 * H:1 * H])
        f_g = jax.nn.sigmoid(z[:, 1 * H:2 * H])
        g_g = jnp.tanh(z[:, 2 * H:3 * H])
        o_g = jax.nn.sigmoid(z[:, 3 * H:4 * H])
        c = f_g * c + i_g * g_g
        h = o_g * jnp.tanh(c)
        outs.append(h)
    return jnp.stack(outs), (h, c)


if __name__ == "__main__":
    T, B, I, H = 8, 8, 32, 32
    SEED = 123
    key = jax.random.PRNGKey(0)
    kx, kp = jax.random.split(key)
    x = jax.random.normal(kx, (T, B, I), dtype=jnp.float32)

    model = WeightDropLSTM(I, H, p=0.5, key=kp)
    out, (h_n, c_n) = model.forward(x, seed=SEED)
    jax.block_until_ready((out, h_n, c_n))

    assert out.shape == (T, B, H)
    assert h_n.shape == (B, H) and c_n.shape == (B, H)
    assert bool(jnp.all(jnp.isfinite(out)))
    assert bool(jnp.allclose(out[-1], h_n, atol=1e-6))

    # compare against a pure-JAX reference using the same dropout mask
    bits = _dropout_bits(jax.random.PRNGKey(SEED), H)
    ref_out, (ref_h, ref_c) = _reference_forward(
        x, model.w_ih, model.w_hh_raw, model.b_ih, model.b_hh, bits, model.p)
    assert bool(jnp.allclose(out, ref_out, atol=1e-1))   # bf16 MXU tolerance
    assert bool(jnp.allclose(c_n, ref_c, atol=1e-1))

    print("KERNEL_OK")
</pallas_src>

<mosaic_0001>
module attributes {stable_mosaic.version = 11 : i64} {
  func.func @_wd_lstm_kernel(%arg0: i32, %arg1: memref<4x8x32xf32, #tpu.memory_space<vmem>>, %arg2: memref<32x128xbf16, #tpu.memory_space<vmem>>, %arg3: memref<32x128xbf16, #tpu.memory_space<vmem>>, %arg4: memref<32x128xi32, #tpu.memory_space<vmem>>, %arg5: memref<1x128xf32, #tpu.memory_space<vmem>>, %arg6: memref<4x8x32xf32, #tpu.memory_space<vmem>>, %arg7: memref<8x32xf32, #tpu.memory_space<vmem>>, %arg8: memref<8x32xf32, #tpu.memory_space<vmem>>, %arg9: memref<8x32xf32, #tpu.memory_space<vmem>>, %arg10: memref<8x32xf32, #tpu.memory_space<vmem>>, %arg11: memref<32x128xbf16, #tpu.memory_space<vmem>>, %arg12: memref<4x8x128xf32, #tpu.memory_space<vmem>>) attributes {dimension_semantics = [#tpu.dimension_semantics<arbitrary>], iteration_bounds = array<i64: 2>, scalar_prefetch = 0 : i64, scratch_operands = 4 : i64, tpu.core_type = #tpu.core_type<tc>, window_params = [{transform_indices = @transform_0, window_bounds = array<i64: 4, 8, 32>}, {pipeline_mode = #tpu.pipeline_mode<synchronous>, transform_indices = @transform_1, window_bounds = array<i64: 32, 128>}, {pipeline_mode = #tpu.pipeline_mode<synchronous>, transform_indices = @transform_2, window_bounds = array<i64: 32, 128>}, {pipeline_mode = #tpu.pipeline_mode<synchronous>, transform_indices = @transform_3, window_bounds = array<i64: 32, 128>}, {pipeline_mode = #tpu.pipeline_mode<synchronous>, transform_indices = @transform_4, window_bounds = array<i64: 1, 128>}, {transform_indices = @transform_5, window_bounds = array<i64: 4, 8, 32>}, {pipeline_mode = #tpu.pipeline_mode<synchronous>, transform_indices = @transform_6, window_bounds = array<i64: 8, 32>}, {pipeline_mode = #tpu.pipeline_mode<synchronous>, transform_indices = @transform_7, window_bounds = array<i64: 8, 32>}]} {
    %c0_i32 = arith.constant 0 : i32
    %0 = arith.cmpi eq, %arg0, %c0_i32 : i32
    %1 = arith.extui %0 : i1 to i32
    %c0_i32_0 = arith.constant 0 : i32
    %2 = arith.cmpi ne, %1, %c0_i32_0 : i32
    scf.if %2 {
      %cst_55 = arith.constant 0.000000e+00 : f32
      %162 = vector.broadcast %cst_55 : f32 to vector<8x32xf32>
      %c0_56 = arith.constant 0 : index
      %c0_57 = arith.constant 0 : index
      %163 = vector.load %arg9[%c0_56, %c0_57] : memref<8x32xf32, #tpu.memory_space<vmem>>, vector<8x32xf32>
      tpu.vector_store %arg9[%c0_56, %c0_57], %162 {strides = array<i32>} : memref<8x32xf32, #tpu.memory_space<vmem>>, vector<8x32xf32>,
      %cst_58 = arith.constant 0.000000e+00 : f32
      %164 = vector.broadcast %cst_58 : f32 to vector<8x32xf32>
      %c0_59 = arith.constant 0 : index
      %c0_60 = arith.constant 0 : index
      %165 = vector.load %arg10[%c0_59, %c0_60] : memref<8x32xf32, #tpu.memory_space<vmem>>, vector<8x32xf32>
      tpu.vector_store %arg10[%c0_59, %c0_60], %164 {strides = array<i32>} : memref<8x32xf32, #tpu.memory_space<vmem>>, vector<8x32xf32>,
      %c0_61 = arith.constant 0 : index
      %c0_62 = arith.constant 0 : index
      %166 = vector.load %arg4[%c0_61, %c0_62] : memref<32x128xi32, #tpu.memory_space<vmem>>, vector<32x128xi32>
      %c-2147483648_i32 = arith.constant -2147483648 : i32
      %167 = vector.broadcast %c-2147483648_i32 : i32 to vector<32x128xi32>
      %168 = arith.cmpi uge, %166, %167 : vector<32x128xi32>
      %169 = arith.extui %168 : vector<32x128xi1> to vector<32x128xi32>
      %170 = arith.sitofp %169 : vector<32x128xi32> to vector<32x128xf32>
      %c0_63 = arith.constant 0 : index
      %c0_64 = arith.constant 0 : index
      %171 = vector.load %arg3[%c0_63, %c0_64] : memref<32x128xbf16, #tpu.memory_space<vmem>>, vector<32x128xbf16>
      %172 = arith.extf %171 : vector<32x128xbf16> to vector<32x128xf32>
      %173 = arith.mulf %172, %170 : vector<32x128xf32>
      %cst_65 = arith.constant 2.000000e+00 : f32
      %174 = vector.broadcast %cst_65 : f32 to vector<32x128xf32>
      %175 = arith.mulf %173, %174 : vector<32x128xf32>
      %176 = arith.truncf %175 : vector<32x128xf32> to vector<32x128xbf16>
      %c0_66 = arith.constant 0 : index
      %c0_67 = arith.constant 0 : index
      %177 = vector.load %arg11[%c0_66, %c0_67] : memref<32x128xbf16, #tpu.memory_space<vmem>>, vector<32x128xbf16>
      tpu.vector_store %arg11[%c0_66, %c0_67], %176 {strides = array<i32>} : memref<32x128xbf16, #tpu.memory_space<vmem>>, vector<32x128xbf16>,
    } else {
    }
    %c0 = arith.constant 0 : index
    %c0_1 = arith.constant 0 : index
    %c0_2 = arith.constant 0 : index
    %3 = vector.load %arg1[%c0, %c0_1, %c0_2] : memref<4x8x32xf32, #tpu.memory_space<vmem>>, vector<4x8x32xf32>
    %4 = vector.shape_cast %3 : vector<4x8x32xf32> to vector<32x32xf32>
    %5 = arith.truncf %4 : vector<32x32xf32> to vector<32x32xbf16>
    %c0_3 = arith.constant 0 : index
    %c0_4 = arith.constant 0 : index
    %6 = vector.load %arg2[%c0_3, %c0_4] : memref<32x128xbf16, #tpu.memory_space<vmem>>, vector<32x128xbf16>
    %cst = arith.constant dense<0.000000e+00> : vector<32x128xf32>
    %7 = tpu.matmul %5, %6, %cst {dimension_numbers = #tpu.dot_dimension_numbers<[1], [0], [0], [1], [0, 0, 1, 1], [], []>} : vector<32x32xbf16>, vector<32x128xbf16>, vector<32x128xf32> -> vector<32x128xf32>
    %8 = vector.shape_cast %7 : vector<32x128xf32> to vector<4x8x128xf32>
    %c0_5 = arith.constant 0 : index
    %c0_6 = arith.constant 0 : index
    %9 = vector.load %arg5[%c0_5, %c0_6] : memref<1x128xf32, #tpu.memory_space<vmem>>, vector<1x128xf32>
    %10 = vector.shape_cast %9 : vector<1x128xf32> to vector<1x1x128xf32>
    %11 = vector.broadcast %10 : vector<1x1x128xf32> to vector<4x8x128xf32>
    %12 = arith.addf %8, %11 : vector<4x8x128xf32>
    %c0_7 = arith.constant 0 : index
    %c0_8 = arith.constant 0 : index
    %c0_9 = arith.constant 0 : index
    %13 = vector.load %arg12[%c0_7, %c0_8, %c0_9] : memref<4x8x128xf32, #tpu.memory_space<vmem>>, vector<4x8x128xf32>
    tpu.vector_store %arg12[%c0_7, %c0_8, %c0_9], %12 {strides = array<i32>} : memref<4x8x128xf32, #tpu.memory_space<vmem>>, vector<4x8x128xf32>,
    %c0_10 = arith.constant 0 : index
    %c0_11 = arith.constant 0 : index
    %14 = vector.load %arg11[%c0_10, %c0_11] : memref<32x128xbf16, #tpu.memory_space<vmem>>, vector<32x128xbf16>
    %c0_12 = arith.constant 0 : index
    %c0_13 = arith.constant 0 : index
    %15 = vector.load %arg9[%c0_12, %c0_13] : memref<8x32xf32, #tpu.memory_space<vmem>>, vector<8x32xf32>
    %c0_14 = arith.constant 0 : index
    %c0_15 = arith.constant 0 : index
    %16 = vector.load %arg10[%c0_14, %c0_15] : memref<8x32xf32, #tpu.memory_space<vmem>>, vector<8x32xf32>
    %c0_i32_16 = arith.constant 0 : i32
    %17 = arith.index_cast %c0_i32_16 : i32 to index
    %c0_17 = arith.constant 0 : index
    %c0_18 = arith.constant 0 : index
    %18 = vector.load %arg12[%17, %c0_17, %c0_18] : memref<4x8x128xf32, #tpu.memory_space<vmem>>, vector<1x8x128xf32>
    %19 = vector.shape_cast %18 : vector<1x8x128xf32> to vector<8x128xf32>
    %20 = arith.truncf %15 : vector<8x32xf32> to vector<8x32xbf16>
    %cst_19 = arith.constant dense<0.000000e+00> : vector<8x128xf32>
    %21 = tpu.matmul %20, %14, %cst_19 {dimension_numbers = #tpu.dot_dimension_numbers<[1], [0], [0], [1], [0, 0, 1, 1], [], []>} : vector<8x32xbf16>, vector<32x128xbf16>, vector<8x128xf32> -> vector<8x128xf32>
    %22 = arith.addf %19, %21 : vector<8x128xf32>
    %23 = vector.extract_strided_slice %22 {offsets = [0, 0], sizes = [8, 32], strides = [1, 1]} : vector<8x128xf32> to vector<8x32xf32>
    %24 = arith.negf %23 : vector<8x32xf32>
    %25 = math.exp %24 : vector<8x32xf32>
    %cst_20 = arith.constant 1.000000e+00 : f32
    %26 = vector.broadcast %cst_20 : f32 to vector<8x32xf32>
    %27 = arith.addf %26, %25 : vector<8x32xf32>
    %28 = arith.divf %26, %27 : vector<8x32xf32>
    %29 = vector.extract_strided_slice %22 {offsets = [0, 32], sizes = [8, 32], strides = [1, 1]} : vector<8x128xf32> to vector<8x32xf32>
    %30 = arith.negf %29 : vector<8x32xf32>
    %31 = math.exp %30 : vector<8x32xf32>
    %cst_21 = arith.constant 1.000000e+00 : f32
    %32 = vector.broadcast %cst_21 : f32 to vector<8x32xf32>
    %33 = arith.addf %32, %31 : vector<8x32xf32>
    %34 = arith.divf %32, %33 : vector<8x32xf32>
    %35 = vector.extract_strided_slice %22 {offsets = [0, 64], sizes = [8, 32], strides = [1, 1]} : vector<8x128xf32> to vector<8x32xf32>
    %36 = math.tanh %35 : vector<8x32xf32>
    %37 = vector.extract_strided_slice %22 {offsets = [0, 96], sizes = [8, 32], strides = [1, 1]} : vector<8x128xf32> to vector<8x32xf32>
    %38 = arith.negf %37 : vector<8x32xf32>
    %39 = math.exp %38 : vector<8x32xf32>
    %cst_22 = arith.constant 1.000000e+00 : f32
    %40 = vector.broadcast %cst_22 : f32 to vector<8x32xf32>
    %41 = arith.addf %40, %39 : vector<8x32xf32>
    %42 = arith.divf %40, %41 : vector<8x32xf32>
    %43 = arith.mulf %34, %16 : vector<8x32xf32>
    %44 = arith.mulf %28, %36 : vector<8x32xf32>
    %45 = arith.addf %43, %44 : vector<8x32xf32>
    %46 = math.tanh %45 : vector<8x32xf32>
    %47 = arith.mulf %42, %46 : vector<8x32xf32>
    %48 = arith.index_cast %c0_i32_16 : i32 to index
    %c0_23 = arith.constant 0 : index
    %c0_24 = arith.constant 0 : index
    %49 = vector.load %arg6[%48, %c0_23, %c0_24] : memref<4x8x32xf32, #tpu.memory_space<vmem>>, vector<1x8x32xf32>
    %50 = vector.shape_cast %49 : vector<1x8x32xf32> to vector<8x32xf32>
    %51 = vector.shape_cast %47 : vector<8x32xf32> to vector<1x8x32xf32>
    tpu.vector_store %arg6[%48, %c0_23, %c0_24], %51 {strides = array<i32>} : memref<4x8x32xf32, #tpu.memory_space<vmem>>, vector<1x8x32xf32>,
    %c1_i32 = arith.constant 1 : i32
    %52 = arith.index_cast %c1_i32 : i32 to index
    %c0_25 = arith.constant 0 : index
    %c0_26 = arith.constant 0 : index
    %53 = vector.load %arg12[%52, %c0_25, %c0_26] : memref<4x8x128xf32, #tpu.memory_space<vmem>>, vector<1x8x128xf32>
    %54 = vector.shape_cast %53 : vector<1x8x128xf32> to vector<8x128xf32>
    %55 = arith.truncf %47 : vector<8x32xf32> to vector<8x32xbf16>
    %cst_27 = arith.constant dense<0.000000e+00> : vector<8x128xf32>
    %56 = tpu.matmul %55, %14, %cst_27 {dimension_numbers = #tpu.dot_dimension_numbers<[1], [0], [0], [1], [0, 0, 1, 1], [], []>} : vector<8x32xbf16>, vector<32x128xbf16>, vector<8x128xf32> -> vector<8x128xf32>
    %57 = arith.addf %54, %56 : vector<8x128xf32>
    %58 = vector.extract_strided_slice %57 {offsets = [0, 0], sizes = [8, 32], strides = [1, 1]} : vector<8x128xf32> to vector<8x32xf32>
    %59 = arith.negf %58 : vector<8x32xf32>
    %60 = math.exp %59 : vector<8x32xf32>
    %cst_28 = arith.constant 1.000000e+00 : f32
    %61 = vector.broadcast %cst_28 : f32 to vector<8x32xf32>
    %62 = arith.addf %61, %60 : vector<8x32xf32>
    %63 = arith.divf %61, %62 : vector<8x32xf32>
    %64 = vector.extract_strided_slice %57 {offsets = [0, 32], sizes = [8, 32], strides = [1, 1]} : vector<8x128xf32> to vector<8x32xf32>
    %65 = arith.negf %64 : vector<8x32xf32>
    %66 = math.exp %65 : vector<8x32xf32>
    %cst_29 = arith.constant 1.000000e+00 : f32
    %67 = vector.broadcast %cst_29 : f32 to vector<8x32xf32>
    %68 = arith.addf %67, %66 : vector<8x32xf32>
    %69 = arith.divf %67, %68 : vector<8x32xf32>
    %70 = vector.extract_strided_slice %57 {offsets = [0, 64], sizes = [8, 32], strides = [1, 1]} : vector<8x128xf32> to vector<8x32xf32>
    %71 = math.tanh %70 : vector<8x32xf32>
    %72 = vector.extract_strided_slice %57 {offsets = [0, 96], sizes = [8, 32], strides = [1, 1]} : vector<8x128xf32> to vector<8x32xf32>
    %73 = arith.negf %72 : vector<8x32xf32>
    %74 = math.exp %73 : vector<8x32xf32>
    %cst_30 = arith.constant 1.000000e+00 : f32
    %75 = vector.broadcast %cst_30 : f32 to vector<8x32xf32>
    %76 = arith.addf %75, %74 : vector<8x32xf32>
    %77 = arith.divf %75, %76 : vector<8x32xf32>
    %78 = arith.mulf %69, %45 : vector<8x32xf32>
    %79 = arith.mulf %63, %71 : vector<8x32xf32>
    %80 = arith.addf %78, %79 : vector<8x32xf32>
    %81 = math.tanh %80 : vector<8x32xf32>
    %82 = arith.mulf %77, %81 : vector<8x32xf32>
    %83 = arith.index_cast %c1_i32 : i32 to index
    %c0_31 = arith.constant 0 : index
    %c0_32 = arith.constant 0 : index
    %84 = vector.load %arg6[%83, %c0_31, %c0_32] : memref<4x8x32xf32, #tpu.memory_space<vmem>>, vector<1x8x32xf32>
    %85 = vector.shape_cast %84 : vector<1x8x32xf32> to vector<8x32xf32>
    %86 = vector.shape_cast %82 : vector<8x32xf32> to vector<1x8x32xf32>
    tpu.vector_store %arg6[%83, %c0_31, %c0_32], %86 {strides = array<i32>} : memref<4x8x32xf32, #tpu.memory_space<vmem>>, vector<1x8x32xf32>,
    %c2_i32 = arith.constant 2 : i32
    %87 = arith.index_cast %c2_i32 : i32 to index
    %c0_33 = arith.constant 0 : index
    %c0_34 = arith.constant 0 : index
    %88 = vector.load %arg12[%87, %c0_33, %c0_34] : memref<4x8x128xf32, #tpu.memory_space<vmem>>, vector<1x8x128xf32>
    %89 = vector.shape_cast %88 : vector<1x8x128xf32> to vector<8x128xf32>
    %90 = arith.truncf %82 : vector<8x32xf32> to vector<8x32xbf16>
    %cst_35 = arith.constant dense<0.000000e+00> : vector<8x128xf32>
    %91 = tpu.matmul %90, %14, %cst_35 {dimension_numbers = #tpu.dot_dimension_numbers<[1], [0], [0], [1], [0, 0, 1, 1], [], []>} : vector<8x32xbf16>, vector<32x128xbf16>, vector<8x128xf32> -> vector<8x128xf32>
    %92 = arith.addf %89, %91 : vector<8x128xf32>
    %93 = vector.extract_strided_slice %92 {offsets = [0, 0], sizes = [8, 32], strides = [1, 1]} : vector<8x128xf32> to vector<8x32xf32>
    %94 = arith.negf %93 : vector<8x32xf32>
    %95 = math.exp %94 : vector<8x32xf32>
    %cst_36 = arith.constant 1.000000e+00 : f32
    %96 = vector.broadcast %cst_36 : f32 to vector<8x32xf32>
    %97 = arith.addf %96, %95 : vector<8x32xf32>
    %98 = arith.divf %96, %97 : vector<8x32xf32>
    %99 = vector.extract_strided_slice %92 {offsets = [0, 32], sizes = [8, 32], strides = [1, 1]} : vector<8x128xf32> to vector<8x32xf32>
    %100 = arith.negf %99 : vector<8x32xf32>
    %101 = math.exp %100 : vector<8x32xf32>
    %cst_37 = arith.constant 1.000000e+00 : f32
    %102 = vector.broadcast %cst_37 : f32 to vector<8x32xf32>
    %103 = arith.addf %102, %101 : vector<8x32xf32>
    %104 = arith.divf %102, %103 : vector<8x32xf32>
    %105 = vector.extract_strided_slice %92 {offsets = [0, 64], sizes = [8, 32], strides = [1, 1]} : vector<8x128xf32> to vector<8x32xf32>
    %106 = math.tanh %105 : vector<8x32xf32>
    %107 = vector.extract_strided_slice %92 {offsets = [0, 96], sizes = [8, 32], strides = [1, 1]} : vector<8x128xf32> to vector<8x32xf32>
    %108 = arith.negf %107 : vector<8x32xf32>
    %109 = math.exp %108 : vector<8x32xf32>
    %cst_38 = arith.constant 1.000000e+00 : f32
    %110 = vector.broadcast %cst_38 : f32 to vector<8x32xf32>
    %111 = arith.addf %110, %109 : vector<8x32xf32>
    %112 = arith.divf %110, %111 : vector<8x32xf32>
    %113 = arith.mulf %104, %80 : vector<8x32xf32>
    %114 = arith.mulf %98, %106 : vector<8x32xf32>
    %115 = arith.addf %113, %114 : vector<8x32xf32>
    %116 = math.tanh %115 : vector<8x32xf32>
    %117 = arith.mulf %112, %116 : vector<8x32xf32>
    %118 = arith.index_cast %c2_i32 : i32 to index
    %c0_39 = arith.constant 0 : index
    %c0_40 = arith.constant 0 : index
    %119 = vector.load %arg6[%118, %c0_39, %c0_40] : memref<4x8x32xf32, #tpu.memory_space<vmem>>, vector<1x8x32xf32>
    %120 = vector.shape_cast %119 : vector<1x8x32xf32> to vector<8x32xf32>
    %121 = vector.shape_cast %117 : vector<8x32xf32> to vector<1x8x32xf32>
    tpu.vector_store %arg6[%118, %c0_39, %c0_40], %121 {strides = array<i32>} : memref<4x8x32xf32, #tpu.memory_space<vmem>>, vector<1x8x32xf32>,
    %c3_i32 = arith.constant 3 : i32
    %122 = arith.index_cast %c3_i32 : i32 to index
    %c0_41 = arith.constant 0 : index
    %c0_42 = arith.constant 0 : index
    %123 = vector.load %arg12[%122, %c0_41, %c0_42] : memref<4x8x128xf32, #tpu.memory_space<vmem>>, vector<1x8x128xf32>
    %124 = vector.shape_cast %123 : vector<1x8x128xf32> to vector<8x128xf32>
    %125 = arith.truncf %117 : vector<8x32xf32> to vector<8x32xbf16>
    %cst_43 = arith.constant dense<0.000000e+00> : vector<8x128xf32>
    %126 = tpu.matmul %125, %14, %cst_43 {dimension_numbers = #tpu.dot_dimension_numbers<[1], [0], [0], [1], [0, 0, 1, 1], [], []>} : vector<8x32xbf16>, vector<32x128xbf16>, vector<8x128xf32> -> vector<8x128xf32>
    %127 = arith.addf %124, %126 : vector<8x128xf32>
    %128 = vector.extract_strided_slice %127 {offsets = [0, 0], sizes = [8, 32], strides = [1, 1]} : vector<8x128xf32> to vector<8x32xf32>
    %129 = arith.negf %128 : vector<8x32xf32>
    %130 = math.exp %129 : vector<8x32xf32>
    %cst_44 = arith.constant 1.000000e+00 : f32
    %131 = vector.broadcast %cst_44 : f32 to vector<8x32xf32>
    %132 = arith.addf %131, %130 : vector<8x32xf32>
    %133 = arith.divf %131, %132 : vector<8x32xf32>
    %134 = vector.extract_strided_slice %127 {offsets = [0, 32], sizes = [8, 32], strides = [1, 1]} : vector<8x128xf32> to vector<8x32xf32>
    %135 = arith.negf %134 : vector<8x32xf32>
    %136 = math.exp %135 : vector<8x32xf32>
    %cst_45 = arith.constant 1.000000e+00 : f32
    %137 = vector.broadcast %cst_45 : f32 to vector<8x32xf32>
    %138 = arith.addf %137, %136 : vector<8x32xf32>
    %139 = arith.divf %137, %138 : vector<8x32xf32>
    %140 = vector.extract_strided_slice %127 {offsets = [0, 64], sizes = [8, 32], strides = [1, 1]} : vector<8x128xf32> to vector<8x32xf32>
    %141 = math.tanh %140 : vector<8x32xf32>
    %142 = vector.extract_strided_slice %127 {offsets = [0, 96], sizes = [8, 32], strides = [1, 1]} : vector<8x128xf32> to vector<8x32xf32>
    %143 = arith.negf %142 : vector<8x32xf32>
    %144 = math.exp %143 : vector<8x32xf32>
    %cst_46 = arith.constant 1.000000e+00 : f32
    %145 = vector.broadcast %cst_46 : f32 to vector<8x32xf32>
    %146 = arith.addf %145, %144 : vector<8x32xf32>
    %147 = arith.divf %145, %146 : vector<8x32xf32>
    %148 = arith.mulf %139, %115 : vector<8x32xf32>
    %149 = arith.mulf %133, %141 : vector<8x32xf32>
    %150 = arith.addf %148, %149 : vector<8x32xf32>
    %151 = math.tanh %150 : vector<8x32xf32>
    %152 = arith.mulf %147, %151 : vector<8x32xf32>
    %153 = arith.index_cast %c3_i32 : i32 to index
    %c0_47 = arith.constant 0 : index
    %c0_48 = arith.constant 0 : index
    %154 = vector.load %arg6[%153, %c0_47, %c0_48] : memref<4x8x32xf32, #tpu.memory_space<vmem>>, vector<1x8x32xf32>
    %155 = vector.shape_cast %154 : vector<1x8x32xf32> to vector<8x32xf32>
    %156 = vector.shape_cast %152 : vector<8x32xf32> to vector<1x8x32xf32>
    tpu.vector_store %arg6[%153, %c0_47, %c0_48], %156 {strides = array<i32>} : memref<4x8x32xf32, #tpu.memory_space<vmem>>, vector<1x8x32xf32>,
    %c4_i32 = arith.constant 4 : i32
    %c0_49 = arith.constant 0 : index
    %c0_50 = arith.constant 0 : index
    %157 = vector.load %arg9[%c0_49, %c0_50] : memref<8x32xf32, #tpu.memory_space<vmem>>, vector<8x32xf32>
    tpu.vector_store %arg9[%c0_49, %c0_50], %152 {strides = array<i32>} : memref<8x32xf32, #tpu.memory_space<vmem>>, vector<8x32xf32>,
    %c0_51 = arith.constant 0 : index
    %c0_52 = arith.constant 0 : index
    %158 = vector.load %arg10[%c0_51, %c0_52] : memref<8x32xf32, #tpu.memory_space<vmem>>, vector<8x32xf32>
    tpu.vector_store %arg10[%c0_51, %c0_52], %150 {strides = array<i32>} : memref<8x32xf32, #tpu.memory_space<vmem>>, vector<8x32xf32>,
    %c1_i32_53 = arith.constant 1 : i32
    %159 = arith.cmpi eq, %arg0, %c1_i32_53 : i32
    %160 = arith.extui %159 : i1 to i32
    %c0_i32_54 = arith.constant 0 : i32
    %161 = arith.cmpi ne, %160, %c0_i32_54 : i32
    scf.if %161 {
      %c0_55 = arith.constant 0 : index
      %c0_56 = arith.constant 0 : index
      %162 = vector.load %arg7[%c0_55, %c0_56] : memref<8x32xf32, #tpu.memory_space<vmem>>, vector<8x32xf32>
      tpu.vector_store %arg7[%c0_55, %c0_56], %152 {strides = array<i32>} : memref<8x32xf32, #tpu.memory_space<vmem>>, vector<8x32xf32>,
      %c0_57 = arith.constant 0 : index
      %c0_58 = arith.constant 0 : index
      %163 = vector.load %arg8[%c0_57, %c0_58] : memref<8x32xf32, #tpu.memory_space<vmem>>, vector<8x32xf32>
      tpu.vector_store %arg8[%c0_57, %c0_58], %150 {strides = array<i32>} : memref<8x32xf32, #tpu.memory_space<vmem>>, vector<8x32xf32>,
    } else {
    }
    return
  }
  func.func @transform_0(%arg0: i32) -> (i32, i32, i32) {
    %c0_i32 = arith.constant 0 : i32
    %c0_i32_0 = arith.constant 0 : i32
    %c0_i32_1 = arith.constant 0 : i32
    return %arg0, %c0_i32, %c0_i32_0 : i32, i32, i32
  }
  func.func @transform_1(%arg0: i32) -> (i32, i32) {
    %c0_i32 = arith.constant 0 : i32
    %c0_i32_0 = arith.constant 0 : i32
    %c0_i32_1 = arith.constant 0 : i32
    return %c0_i32, %c0_i32_0 : i32, i32
  }
  func.func @transform_2(%arg0: i32) -> (i32, i32) {
    %c0_i32 = arith.constant 0 : i32
    %c0_i32_0 = arith.constant 0 : i32
    %c0_i32_1 = arith.constant 0 : i32
    return %c0_i32, %c0_i32_0 : i32, i32
  }
  func.func @transform_3(%arg0: i32) -> (i32, i32) {
    %c0_i32 = arith.constant 0 : i32
    %c0_i32_0 = arith.constant 0 : i32
    %c0_i32_1 = arith.constant 0 : i32
    return %c0_i32, %c0_i32_0 : i32, i32
  }
  func.func @transform_4(%arg0: i32) -> (i32, i32) {
    %c0_i32 = arith.constant 0 : i32
    %c0_i32_0 = arith.constant 0 : i32
    %c0_i32_1 = arith.constant 0 : i32
    return %c0_i32, %c0_i32_0 : i32, i32
  }
  func.func @transform_5(%arg0: i32) -> (i32, i32, i32) {
    %c0_i32 = arith.constant 0 : i32
    %c0_i32_0 = arith.constant 0 : i32
    %c0_i32_1 = arith.constant 0 : i32
    return %arg0, %c0_i32, %c0_i32_0 : i32, i32, i32
  }
  func.func @transform_6(%arg0: i32) -> (i32, i32) {
    %c0_i32 = arith.constant 0 : i32
    %c0_i32_0 = arith.constant 0 : i32
    %c0_i32_1 = arith.constant 0 : i32
    return %c0_i32, %c0_i32_0 : i32, i32
  }
  func.func @transform_7(%arg0: i32) -> (i32, i32) {
    %c0_i32 = arith.constant 0 : i32
    %c0_i32_0 = arith.constant 0 : i32
    %c0_i32_1 = arith.constant 0 : i32
    return %c0_i32, %c0_i32_0 : i32, i32
  }
}

</mosaic_0001>

<llo_original>
// kernel: tpu_custom_call.1
$region0: #{tpu_custom_call.1}
  #allocation0 [shape = 'u32[]', space=smem, size = 0x4, offset = 0x4, fixed_abs, tag = 'smem constant byte address 0x4 - core index']
  #allocation1 [shape = 'u32[144,128]{1,0:T(1,128)}', space=vmem, size = 0x12000, scoped, tag = 'internal scratch']
  #allocation2 [shape = 'f32[8,32]{1,0:T(8,128)}', space=vmem, size = 0x1000, scoped, tag = 'scratch operand']
  #allocation3 [shape = 'f32[8,32]{1,0:T(8,128)}', space=vmem, size = 0x1000, scoped, tag = 'scratch operand']
  #allocation4 [shape = 'bf16[32,128]{1,0:T(16,128)(2,1)}', space=vmem, size = 0x2000, scoped, tag = 'scratch operand']
  #allocation5 [shape = 'f32[4,8,128]{2,1,0:T(8,128)}', space=vmem, size = 0x4000, scoped, tag = 'scratch operand']
  %s0 = inlined_call_operand.hbm [shape: f32[8,8,32], index: 0, kind: input, shape index: {}]
  %s1 = inlined_call_operand.hbm [shape: bf16[32,128], index: 1, kind: input, shape index: {}]
  %s2 = inlined_call_operand.hbm [shape: bf16[32,128], index: 2, kind: input, shape index: {}]
  %s3 = inlined_call_operand.hbm [shape: u32[32,128], index: 3, kind: input, shape index: {}]
  %s4 = inlined_call_operand.vmem [shape: f32[1,128], index: 4, kind: input, shape index: {}]
  %s5 = inlined_call_operand.hbm [shape: f32[8,8,32], index: 5, kind: output, shape index: {0}]
  %s6 = inlined_call_operand.hbm [shape: f32[8,32], index: 6, kind: output, shape index: {1}]
  %s7 = inlined_call_operand.hbm [shape: f32[8,32], index: 7, kind: output, shape index: {2}]
  %8 = xla_tuple %s5, %s6, %s7
  %s9 = sld [smem:[#allocation0]]
  $region93: #{tpu_custom_call.1} parent=0
    _
  %s11 = ssub.s32 1, %s9
  %s12 = scalar_select 0, %s11, %s9
  $region1: #{tpu_custom_call.1} parent=0
    #allocation6 [shape = 'u8[32768]{0}', space=vmem, size = 0x8000, scoped, tag = 'input window, operand 0']
    #allocation7 [shape = 's32[2]{0}', space=sflag, size = 0x8, scoped, tag = 'scoped memory for tpu_custom_call.1']
    #allocation8 [shape = 's32[2]{0}', space=sflag, size = 0x8, scoped, tag = 'scoped memory for tpu_custom_call.1']
    #allocation9 [shape = 'u8[8192]{0}', space=vmem, size = 0x2000, scoped, tag = 'input window, operand 1, single buffered']
    #allocation10 [shape = 's32[1]{0}', space=sflag, size = 0x4, scoped, tag = 'scoped memory for tpu_custom_call.1']
    #allocation11 [shape = 'u8[8192]{0}', space=vmem, size = 0x2000, scoped, tag = 'input window, operand 2, single buffered']
    #allocation12 [shape = 'u8[16384]{0}', space=vmem, size = 0x4000, scoped, tag = 'input window, operand 3, single buffered']
    #allocation13 [shape = 's32[1]{0}', space=sflag, size = 0x4, scoped, tag = 'scoped memory for tpu_custom_call.1']
    #allocation14 [shape = 'u8[32768]{0}', space=vmem, size = 0x8000, scoped, tag = 'output window, operand 0']
    #allocation15 [shape = 'u8[4096]{0}', space=vmem, size = 0x1000, scoped, tag = 'output window, operand 1, single buffered']
    #allocation16 [shape = 's32[1]{0}', space=sflag, size = 0x4, scoped, tag = 'scoped memory for tpu_custom_call.1']
    #allocation17 [shape = 'u8[4096]{0}', space=vmem, size = 0x1000, scoped, tag = 'output window, operand 2, single buffered']
    %13 = vsyncpa [#allocation7], 0
    %s14 = scalar_lea.sflag [#allocation7], 1
    %15 = vsyncpa %s14, 0
    %16 = vsyncpa [#allocation10], 0
    %17 = vsyncpa [#allocation13], 0
    %18 = vsyncpa [#allocation8], 0
    %s19 = scalar_lea.sflag [#allocation8], 1
    %20 = vsyncpa %s19, 0
    %21 = vsyncpa [#allocation16], 0
    loop: start=0, step=1, limit=4
    $region2: #{tpu_custom_call.1} parent=1 // loop_pre_header
      _
    $region3: #{tpu_custom_call.1} parent=1 // loop_header
      %s23 = sphi 0, %s27
      %p24 = scmp.ge.s32.totalorder %s23, 4
      %s33 = sphi 0, %s35
      %s36 = sphi 0, %s33
      %s37 = sphi 0, %s36
      %s53 = sphi 0, %s37
      %s57 = sphi 0, %s57
      %s59 = sphi 0, %s57
      %s60 = sphi 0, %s59
      %s74 = sphi 0, %s60
      %s78 = sphi 0, %s78
      %s80 = sphi 0, %s78
      %s81 = sphi 0, %s80
      %s95 = sphi 0, %s81
      %s99 = sphi 0, %s99
      %s101 = sphi 0, %s99
      %s102 = sphi 0, %s101
      %s116 = sphi 0, %s102
      %s120 = sphi 0, %s120
      %s122 = sphi 0, %s120
      %s123 = sphi 0, %s122
      %s137 = sphi 0, %s123
      %s143 = sphi 0, %s145
      %s146 = sphi 0, %s143
      %s147 = sphi 0, %s146
      %s163 = sphi 0, %s147
      %s167 = sphi 0, %s167
      %s169 = sphi 0, %s167
      %s170 = sphi 0, %s169
      %s184 = sphi 0, %s170
      %s188 = sphi 0, %s188
      %s190 = sphi 0, %s188
      %s191 = sphi 0, %s190
      %s205 = sphi 0, %s191
    $region4: #{tpu_custom_call.1} parent=1 // loop_header_branch
      %26 = sbr.rel (%p24) target = $region8
    $region5: #{tpu_custom_call.1} parent=1 // loop_body
      %s28 = ssub.s32 %s23, 1
      %s29 = ssub.s32 %s23, 2
      %s30 = sadd.s32 %s23, 1
      %s31 = ssub.s32 %s23, %s30
      %p32 = scmp.eq.s32.totalorder %s31, 0
      %s34 = sadd.s32 %s33, 1
      %s35 = scalar_select %p32, %s33, %s34
      %p38 = pneg %p32
      %p39 = scmp.eq.s32.totalorder %s23, 1
      %p40 = por %p38, %p39
      %p41 = scmp.ne.s32.totalorder %s33, %s36
      %p42 = scmp.eq.s32.totalorder %s23, 0
      %p43 = por %p41, %p42
      %p44 = scmp.ne.s32.totalorder %s33, %s36
      %p45 = scmp.eq.s32.totalorder %s28, 1
      %p46 = por %p44, %p45
      %p47 = scmp.ne.s32.totalorder %s36, %s37
      %p48 = scmp.eq.s32.totalorder %s28, 0
      %p49 = por %p47, %p48
      %p50 = scmp.ne.s32.totalorder %s36, %s37
      %p51 = scmp.eq.s32.totalorder %s29, 1
      %p52 = por %p50, %p51
      %p54 = scmp.ne.s32.totalorder %s37, %s53
      %p55 = scmp.eq.s32.totalorder %s29, 0
      %p56 = por %p54, %p55
      %s58 = sadd.s32 %s57, 1
      %p61 = scmp.eq.s32.totalorder %s23, 1
      %p62 = scmp.ne.s32.totalorder %s57, %s59
      %p63 = scmp.eq.s32.totalorder %s23, 0
      %p64 = por %p62, %p63
      %p65 = scmp.ne.s32.totalorder %s57, %s59
      %p66 = scmp.eq.s32.totalorder %s28, 1
      %p67 = por %p65, %p66
      %p68 = scmp.ne.s32.totalorder %s59, %s60
      %p69 = scmp.eq.s32.totalorder %s28, 0
      %p70 = por %p68, %p69
      %p71 = scmp.ne.s32.totalorder %s59, %s60
      %p72 = scmp.eq.s32.totalorder %s29, 1
      %p73 = por %p71, %p72
      %p75 = scmp.ne.s32.totalorder %s60, %s74
      %p76 = scmp.eq.s32.totalorder %s29, 0
      %p77 = por %p75, %p76
      %s79 = sadd.s32 %s78, 1
      %p82 = scmp.eq.s32.totalorder %s23, 1
      %p83 = scmp.ne.s32.totalorder %s78, %s80
      %p84 = scmp.eq.s32.totalorder %s23, 0
      %p85 = por %p83, %p84
      %p86 = scmp.ne.s32.totalorder %s78, %s80
      %p87 = scmp.eq.s32.totalorder %s28, 1
      %p88 = por %p86, %p87
      %p89 = scmp.ne.s32.totalorder %s80, %s81
      %p90 = scmp.eq.s32.totalorder %s28, 0
      %p91 = por %p89, %p90
      %p92 = scmp.ne.s32.totalorder %s80, %s81
      %p93 = scmp.eq.s32.totalorder %s29, 1
      %p94 = por %p92, %p93
      %p96 = scmp.ne.s32.totalorder %s81, %s95
      %p97 = scmp.eq.s32.totalorder %s29, 0
      %p98 = por %p96, %p97
      %s100 = sadd.s32 %s99, 1
      %p103 = scmp.eq.s32.totalorder %s23, 1
      %p104 = scmp.ne.s32.totalorder %s99, %s101
      %p105 = scmp.eq.s32.totalorder %s23, 0
      %p106 = por %p104, %p105
      %p107 = scmp.ne.s32.totalorder %s99, %s101
      %p108 = scmp.eq.s32.totalorder %s28, 1
      %p109 = por %p107, %p108
      %p110 = scmp.ne.s32.totalorder %s101, %s102
      %p111 = scmp.eq.s32.totalorder %s28, 0
      %p112 = por %p110, %p111
      %p113 = scmp.ne.s32.totalorder %s101, %s102
      %p114 = scmp.eq.s32.totalorder %s29, 1
      %p115 = por %p113, %p114
      %p117 = scmp.ne.s32.totalorder %s102, %s116
      %p118 = scmp.eq.s32.totalorder %s29, 0
      %p119 = por %p117, %p118
      %s121 = sadd.s32 %s120, 1
      %p124 = scmp.eq.s32.totalorder %s23, 1
      %p125 = scmp.ne.s32.totalorder %s120, %s122
      %p126 = scmp.eq.s32.totalorder %s23, 0
      %p127 = por %p125, %p126
      %p128 = scmp.ne.s32.totalorder %s120, %s122
      %p129 = scmp.eq.s32.totalorder %s28, 1
      %p130 = por %p128, %p129
      %p131 = scmp.ne.s32.totalorder %s122, %s123
      %p132 = scmp.eq.s32.totalorder %s28, 0
      %p133 = por %p131, %p132
      %p134 = scmp.ne.s32.totalorder %s122, %s123
      %p135 = scmp.eq.s32.totalorder %s29, 1
      %p136 = por %p134, %p135
      %p138 = scmp.ne.s32.totalorder %s123, %s137
      %p139 = scmp.eq.s32.totalorder %s29, 0
      %p140 = por %p138, %p139
      %s141 = ssub.s32 %s23, %s30
      %p142 = scmp.eq.s32.totalorder %s141, 0
      %s144 = sadd.s32 %s143, 1
      %s145 = scalar_select %p142, %s143, %s144
      %p148 = pneg %p142
      %p149 = scmp.eq.s32.totalorder %s23, 1
      %p150 = por %p148, %p149
      %p151 = scmp.ne.s32.totalorder %s143, %s146
      %p152 = scmp.eq.s32.totalorder %s23, 0
      %p153 = por %p151, %p152
      %p154 = scmp.ne.s32.totalorder %s143, %s146
      %p155 = scmp.eq.s32.totalorder %s28, 1
      %p156 = por %p154, %p155
      %p157 = scmp.ne.s32.totalorder %s146, %s147
      %p158 = scmp.eq.s32.totalorder %s28, 0
      %p159 = por %p157, %p158
      %p160 = scmp.ne.s32.totalorder %s146, %s147
      %p161 = scmp.eq.s32.totalorder %s29, 1
      %p162 = por %p160, %p161
      %p164 = scmp.ne.s32.totalorder %s147, %s163
      %p165 = scmp.eq.s32.totalorder %s29, 0
      %p166 = por %p164, %p165
      %s168 = sadd.s32 %s167, 1
      %p171 = scmp.eq.s32.totalorder %s23, 1
      %p172 = scmp.ne.s32.totalorder %s167, %s169
      %p173 = scmp.eq.s32.totalorder %s23, 0
      %p174 = por %p172, %p173
      %p175 = scmp.ne.s32.totalorder %s167, %s169
      %p176 = scmp.eq.s32.totalorder %s28, 1
      %p177 = por %p175, %p176
      %p178 = scmp.ne.s32.totalorder %s169, %s170
      %p179 = scmp.eq.s32.totalorder %s28, 0
      %p180 = por %p178, %p179
      %p181 = scmp.ne.s32.totalorder %s169, %s170
      %p182 = scmp.eq.s32.totalorder %s29, 1
      %p183 = por %p181, %p182
      %p185 = scmp.ne.s32.totalorder %s170, %s184
      %p186 = scmp.eq.s32.totalorder %s29, 0
      %p187 = por %p185, %p186
      %s189 = sadd.s32 %s188, 1
      %p192 = scmp.eq.s32.totalorder %s23, 1
      %p193 = scmp.ne.s32.totalorder %s188, %s190
      %p194 = scmp.eq.s32.totalorder %s23, 0
      %p195 = por %p193, %p194
      %p196 = scmp.ne.s32.totalorder %s188, %s190
      %p197 = scmp.eq.s32.totalorder %s28, 1
      %p198 = por %p196, %p197
      %p199 = scmp.ne.s32.totalorder %s190, %s191
      %p200 = scmp.eq.s32.totalorder %s28, 0
      %p201 = por %p199, %p200
      %p202 = scmp.ne.s32.totalorder %s190, %s191
      %p203 = scmp.eq.s32.totalorder %s29, 1
      %p204 = por %p202, %p203
      %p206 = scmp.ne.s32.totalorder %s191, %s205
      %p207 = scmp.eq.s32.totalorder %s29, 0
      %p208 = por %p206, %p207
      %p209 = scmp.le.s32.totalorder 1, %s23
      %p210 = scmp.lt.s32.totalorder %s23, 3
      %p211 = pnand %p209, %p210
      %p212 = pneg %p211
      // Predicated region
      $region9: #{tpu_custom_call.1} parent=5 // pred_check
        _
      $region10: #{tpu_custom_call.1} parent=5 // pred_check_branch
        %214 = sbr.rel (%p211) target = $region12
      $region11: #{tpu_custom_call.1} parent=5 // pred_region
        %s215 = ssub.s32 %s23, 1
        // Predicated region
        $region13: #{tpu_custom_call.1} parent=11 // pred_check
          %p216 = pneg %p70
        $region14: #{tpu_custom_call.1} parent=11 // pred_check_branch
          %218 = sbr.rel (%p216) target = $region16
        $region15: #{tpu_custom_call.1} parent=11 // pred_region
          %s220 = ssub.s32 256, 256
          %221 = vsyncadd [#allocation10], %s220
          %s222 = sshll.u32 [#allocation9], 4
          %s223 = int_to_ptr.vmem [resolvable:$true] %s222
          %228 = dma.hbm_to_vmem [thread:$0]  %s1, 256, %s223, [#allocation10], 64, 64, 4
        $region16: #{tpu_custom_call.1} parent=11 // pred_fallthru
          _
        // Predicated region
        $region17: #{tpu_custom_call.1} parent=11 // pred_check
          %p229 = pneg %p91
        $region18: #{tpu_custom_call.1} parent=11 // pred_check_branch
          %231 = sbr.rel (%p229) target = $region20
        $region19: #{tpu_custom_call.1} parent=11 // pred_region
          %s233 = ssub.s32 256, 256
          %234 = vsyncadd [#allocation10], %s233
          %s235 = sshll.u32 [#allocation11], 4
          %s236 = int_to_ptr.vmem [resolvable:$true] %s235
          %241 = dma.hbm_to_vmem [thread:$0]  %s2, 256, %s236, [#allocation10], 64, 64, 4
        $region20: #{tpu_custom_call.1} parent=11 // pred_fallthru
          _
        // Predicated region
        $region21: #{tpu_custom_call.1} parent=11 // pred_check
          %p242 = pneg %p112
        $region22: #{tpu_custom_call.1} parent=11 // pred_check_branch
          %244 = sbr.rel (%p242) target = $region24
        $region23: #{tpu_custom_call.1} parent=11 // pred_region
          %s246 = ssub.s32 512, 512
          %247 = vsyncadd [#allocation13], %s246
          %s248 = sshll.u32 [#allocation12], 4
          %s249 = int_to_ptr.vmem [resolvable:$true] %s248
          %254 = dma.hbm_to_vmem [thread:$0]  %s3, 512, %s249, [#allocation13], 128, 128, 8
        $region24: #{tpu_custom_call.1} parent=11 // pred_fallthru
          _
        // Predicated region
        $region25: #{tpu_custom_call.1} parent=11 // pred_check
          %p255 = pneg %p133
        $region26: #{tpu_custom_call.1} parent=11 // pred_check_branch
          %257 = sbr.rel (%p255) target = $region28
        $region27: #{tpu_custom_call.1} parent=11 // pred_region
          _
        $region28: #{tpu_custom_call.1} parent=11 // pred_fallthru
          _
      $region12: #{tpu_custom_call.1} parent=5 // pred_fallthru
        _
      %p258 = scmp.lt.s32.totalorder %s23, 2
      // Predicated region
      $region29: #{tpu_custom_call.1} parent=5 // pred_check
        %p259 = pneg %p258
      $region30: #{tpu_custom_call.1} parent=5 // pred_check_branch
        %261 = sbr.rel (%p259) target = $region32
      $region31: #{tpu_custom_call.1} parent=5 // pred_region
        // Predicated region
        $region33: #{tpu_custom_call.1} parent=31 // pred_check
          %p262 = pneg %p43
        $region34: #{tpu_custom_call.1} parent=31 // pred_check_branch
          %264 = sbr.rel (%p262) target = $region36
        $region35: #{tpu_custom_call.1} parent=31 // pred_region
          %s265 = sand.u32 %s33, 1
          %s266 = scalar_lea.sflag [#allocation7], %s265
          %s267 = sand.u32 %s33, 1
          %s268 = smul.addr %s267, 32
          %s269 = scalar_lea.vmem [#allocation6], %s268
          %s270 = smul.u32 4, %s23
          %s272 = ssub.s32 512, 512
          %273 = vsyncadd %s266, %s272
          %s274 = smul.addr %s270, 128
          %s275 = scalar_lea.hbm %s0, %s274
          %s276 = sshll.u32 %s269, 4
          %s277 = int_to_ptr.vmem [resolvable:$true] %s276
          %282 = dma.hbm_to_vmem [thread:$0]  %s275, 512, %s277, %s266, 128, 128, 8
        $region36: #{tpu_custom_call.1} parent=31 // pred_fallthru
          _
      $region32: #{tpu_custom_call.1} parent=5 // pred_fallthru
        _
      %p283 = scmp.le.s32.totalorder 1, %s23
      %p284 = scmp.lt.s32.totalorder %s23, 3
      %p285 = pnand %p283, %p284
      %p286 = pneg %p285
      // Predicated region
      $region37: #{tpu_custom_call.1} parent=5 // pred_check
        _
      $region38: #{tpu_custom_call.1} parent=5 // pred_check_branch
        %288 = sbr.rel (%p285) target = $region40
      $region39: #{tpu_custom_call.1} parent=5 // pred_region
        %s289 = ssub.s32 %s23, 1
        %s290 = sand.u32 %s36, 1
        %s291 = scalar_lea.sflag [#allocation7], %s290
        %s292 = sand.u32 %s36, 1
        %s293 = smul.addr %s292, 32
        %s294 = scalar_lea.vmem [#allocation6], %s293
        // Predicated region
        $region41: #{tpu_custom_call.1} parent=39 // pred_check
          %p295 = pneg %p49
        $region42: #{tpu_custom_call.1} parent=39 // pred_check_branch
          %297 = sbr.rel (%p295) target = $region44
        $region43: #{tpu_custom_call.1} parent=39 // pred_region
          %298 = dma.done %s291, 512
        $region44: #{tpu_custom_call.1} parent=39 // pred_fallthru
          _
        // Predicated region
        $region45: #{tpu_custom_call.1} parent=39 // pred_check
          %p299 = pneg %p70
        $region46: #{tpu_custom_call.1} parent=39 // pred_check_branch
          %301 = sbr.rel (%p299) target = $region48
        $region47: #{tpu_custom_call.1} parent=39 // pred_region
          %302 = dma.done [#allocation10], 256
        $region48: #{tpu_custom_call.1} parent=39 // pred_fallthru
          _
        // Predicated region
        $region49: #{tpu_custom_call.1} parent=39 // pred_check
          %p303 = pneg %p91
        $region50: #{tpu_custom_call.1} parent=39 // pred_check_branch
          %305 = sbr.rel (%p303) target = $region52
        $region51: #{tpu_custom_call.1} parent=39 // pred_region
          %306 = dma.done [#allocation10], 256
        $region52: #{tpu_custom_call.1} parent=39 // pred_fallthru
          _
        // Predicated region
        $region53: #{tpu_custom_call.1} parent=39 // pred_check
          %p307 = pneg %p112
        $region54: #{tpu_custom_call.1} parent=39 // pred_check_branch
          %309 = sbr.rel (%p307) target = $region56
        $region55: #{tpu_custom_call.1} parent=39 // pred_region
          %310 = dma.done [#allocation13], 512
        $region56: #{tpu_custom_call.1} parent=39 // pred_fallthru
          _
        %s311 = sand.u32 %s36, 1
        %s312 = scalar_lea.sflag [#allocation7], %s311
        %s313 = sand.u32 %s36, 1
        %s314 = smul.addr %s313, 32
        %s315 = scalar_lea.vmem [#allocation6], %s314
        %p316 = pneg %p49
        %p317 = pneg %p46
        %p318 = pneg %p70
        %p319 = pneg %p67
        %p320 = pneg %p91
        %p321 = pneg %p88
        %p322 = pneg %p112
        %p323 = pneg %p109
        %p324 = pneg %p133
        %p325 = pneg %p130
        %p326 = pneg %p159
        %p327 = pneg %p156
        %s328 = sand.u32 %s146, 1
        %s329 = scalar_lea.sflag [#allocation8], %s328
        %s330 = sand.u32 %s146, 1
        %s331 = smul.addr %s330, 32
        %s332 = scalar_lea.vmem [#allocation14], %s331
        %p333 = pneg %p180
        %p334 = pneg %p177
        %p335 = pneg %p201
        %p336 = pneg %p198
        %s337 = smul.u32 4, %s28
        %s338 = smul.u32 4, %s28
        %p340 = scmp.eq.s32.totalorder %s28, 0
        // Predicated region
        $region57: #{tpu_custom_call.1} parent=39 // pred_check
          %p341 = pneg %p340
        $region58: #{tpu_custom_call.1} parent=39 // pred_check_branch
          %343 = sbr.rel (%p341) target = $region60
        $region59: #{tpu_custom_call.1} parent=39 // pred_region
          %vm344 = vcmask 261120
          %345 = vst.msk [vmem:[#allocation2] sm:$0xff] %vm344, 0.0
          %346 = vst.msk [vmem:[#allocation3] sm:$0xff] %vm344, 0.0
          %v347 = vld [vmem:[#allocation12] sm:$0xff]
          %v348 = vld [vmem:[#allocation12 + $0x8] sm:$0xff]
          %v349 = vld [vmem:[#allocation12 + $0x10] sm:$0xff]
          %v350 = vld [vmem:[#allocation12 + $0x18] sm:$0xff]
          %vm351 = vcmp.ge.u32.totalorder %v347, 2147483648
          %vm352 = vcmp.ge.u32.totalorder %v348, 2147483648
          %vm353 = vcmp.ge.u32.totalorder %v349, 2147483648
          %vm354 = vcmp.ge.u32.totalorder %v350, 2147483648
          %v355 = vsel %vm351, 1, 0
          %v356 = vsel %vm352, 1, 0
          %v357 = vsel %vm353, 1, 0
          %v358 = vsel %vm354, 1, 0
          %v359 = vcvt.s32.f32 %v355
          %v360 = vcvt.s32.f32 %v356
          %v361 = vcvt.s32.f32 %v357
          %v362 = vcvt.s32.f32 %v358
          %v363 = vld [vmem:[#allocation11] sm:$0xf]
          %v364 = vld [vmem:[#allocation11 + $0x4] sm:$0xf]
          %v365 = vld [vmem:[#allocation11 + $0x8] sm:$0xf]
          %v366 = vld [vmem:[#allocation11 + $0xc] sm:$0xf]
          %v367 = vunpack.c.l.bf16 %v363
          %v368 = vunpack.c.l.bf16 %v364
          %v369 = vunpack.c.l.bf16 %v365
          %v370 = vunpack.c.l.bf16 %v366
          %v371 = vmul.f32 %v367, %v359
          %v372 = vmul.f32 %v368, %v360
          %v373 = vmul.f32 %v369, %v361
          %v374 = vmul.f32 %v370, %v362
          %v375 = vmul.f32 %v371, 2.0
          %v376 = vmul.f32 %v372, 2.0
          %v377 = vmul.f32 %v373, 2.0
          %v378 = vmul.f32 %v374, 2.0
          %v379 = vpack.c.bf16 %v376, %v375
          %v380 = vpack.c.bf16 %v378, %v377
          %381 = vst [vmem:[#allocation4] sm:$0xff] %v379
          %382 = vst [vmem:[#allocation4 + $0x8] sm:$0xff] %v380
        $region60: #{tpu_custom_call.1} parent=39 // pred_fallthru
          _
        %v383 = vld [vmem:[%s294] sm:$0xff]
        %v384 = vld [vmem:[%s294 + $0x8] sm:$0xff]
        %v385 = vld [vmem:[%s294 + $0x10] sm:$0xff]
        %v386 = vld [vmem:[%s294 + $0x18] sm:$0xff]
        %v387 = vpack.c.bf16 %v384, %v383
        %v388 = vpack.c.bf16 %v386, %v385
        %v389 = vld [vmem:[#allocation9] sm:$0xf]
        %v390 = vld [vmem:[#allocation9 + $0x4] sm:$0xf]
        %v391 = vld [vmem:[#allocation9 + $0x8] sm:$0xf]
        %v392 = vld [vmem:[#allocation9 + $0xc] sm:$0xf]
        %v397 = vunpack.c.l.b16 %v389
        %v398 = vunpack.c.l.b16 %v390
        %v399 = vunpack.c.l.b16 %v391
        %v400 = vunpack.c.l.b16 %v392
        %v401 = vpack.c.b16 %v398, %v397
        %v402 = vpack.c.b16 %v400, %v399
        %vm405 = vcmask 261120
        %v407 = vsel %vm405, %v387, 0
        %v410 = vsel %vm405, %v388, 0
        %412 = vmatprep.subr.bf16.mxu0 0
        %413 = vmatpush1.bf16.msra.mxu0 %v401
        %414 = vmatprep.subr.bf16.mxu0 0
        %415 = vmatpush1.bf16.msra.mxu0 %v402
        %416 = vmatprep.subr.bf16.mxu0 0
        %417 = vmatpush1.bf16.msra.mxu0 0
        %418 = vmatprep.subr.bf16.mxu0 0
        %419 = vmatpush1.bf16.msra.mxu0 0
        %420 = vmatprep.subr.bf16.mxu0 0
        %421 = vmatpush1.bf16.msra.mxu0 0
        %422 = vmatprep.subr.bf16.mxu0 0
        %423 = vmatpush1.bf16.msra.mxu0 0
        %424 = vmatprep.subr.bf16.mxu0 0
        %425 = vmatpush1.bf16.msra.mxu0 0
        %426 = vmatprep.subr.bf16.mxu0 0
        %427 = vmatpush1.bf16.msra.mxu0 0
        %428 = vmatprep.subr.bf16.mxu0 0
        %429 = vmatpush1.bf16.msra.mxu0 0
        %430 = vmatprep.subr.bf16.mxu0 0
        %431 = vmatpush1.bf16.msra.mxu0 0
        %432 = vmatprep.subr.bf16.mxu0 0
        %433 = vmatpush1.bf16.msra.mxu0 0
        %434 = vmatprep.subr.bf16.mxu0 0
        %435 = vmatpush1.bf16.msra.mxu0 0
        %436 = vmatprep.subr.bf16.mxu0 0
        %437 = vmatpush1.bf16.msra.mxu0 0
        %438 = vmatprep.subr.bf16.mxu0 0
        %439 = vmatpush1.bf16.msra.mxu0 0
        %440 = vmatprep.subr.bf16.mxu0 0
        %441 = vmatpush1.bf16.msra.mxu0 0
        %442 = vmatprep.subr.bf16.mxu0 0
        %443 = vmatpush1.bf16.msra.mxu0 0
        %444 = vmatprep.mubr.bf16.mxu0 0
        %445 = vmatmul.mubr.bf16.gmra.mrb[0].mxu0 %v407
        %v446 = vpop.f32.mrb[0].mxu0
        %v447 = vadd.f32 0.0, %v446
        %v448 = vpop.f32.mrb[0].mxu0
        %v449 = vpop.f32.mrb[0].mxu0
        %v450 = vadd.f32 0.0, %v449
        %v451 = vpop.f32.mrb[0].mxu0
        %452 = vmatprep.mubr.bf16.mxu0 0
        %453 = vmatmul.mubr.bf16.gmra.mrb[0].mxu0 %v410
        %v454 = vpop.f32.mrb[0].mxu0
        %v455 = vadd.f32 0.0, %v454
        %v456 = vpop.f32.mrb[0].mxu0
        %v457 = vpop.f32.mrb[0].mxu0
        %v458 = vadd.f32 0.0, %v457
        %v459 = vpop.f32.mrb[0].mxu0
        %460 = vdwg.mxu0
        %v461 = vld [vmem:[%s4] sm:$0x1]
        %v463 = vlaneseq
        %v464 = vshrl.u32 %v463, 7
        %v465 = vsub.s32 0, %v464
        %v466 = vrot.slane %v461, %v465
        %v468 = vadd.f32 %v447, %v466
        %v469 = vadd.f32 %v450, %v466
        %v470 = vadd.f32 %v455, %v466
        %v471 = vadd.f32 %v458, %v466
        %472 = vst [vmem:[#allocation5] sm:$0xff] %v468
        %473 = vst [vmem:[#allocation5 + $0x8] sm:$0xff] %v469
        %474 = vst [vmem:[#allocation5 + $0x10] sm:$0xff] %v470
        %475 = vst [vmem:[#allocation5 + $0x18] sm:$0xff] %v471
        %v476 = vld [vmem:[#allocation4] sm:$0xff]
        %v477 = vld [vmem:[#allocation4 + $0x8] sm:$0xff]
        %v478 = vld [vmem:[#allocation2] sm:$0xff]
        %v479 = vld [vmem:[#allocation3] sm:$0xff]
        %v480 = vld [vmem:[#allocation5] sm:$0xff]
        %v481 = vpack.c.bf16 %v478, %v478
        %v483 = vsel %vm405, %v481, 0
        %485 = vmatprep.subr.bf16.mxu0 0
        %486 = vmatpush1.bf16.msra.mxu0 %v476
        %487 = vmatprep.subr.bf16.mxu0 0
        %488 = vmatpush1.bf16.msra.mxu0 %v477
        %489 = vmatprep.subr.bf16.mxu0 0
        %490 = vmatpush1.bf16.msra.mxu0 0
        %491 = vmatprep.subr.bf16.mxu0 0
        %492 = vmatpush1.bf16.msra.mxu0 0
        %493 = vmatprep.subr.bf16.mxu0 0
        %494 = vmatpush1.bf16.msra.mxu0 0
        %495 = vmatprep.subr.bf16.mxu0 0
        %496 = vmatpush1.bf16.msra.mxu0 0
        %497 = vmatprep.subr.bf16.mxu0 0
        %498 = vmatpush1.bf16.msra.mxu0 0
        %499 = vmatprep.subr.bf16.mxu0 0
        %500 = vmatpush1.bf16.msra.mxu0 0
        %501 = vmatprep.subr.bf16.mxu0 0
        %502 = vmatpush1.bf16.msra.mxu0 0
        %503 = vmatprep.subr.bf16.mxu0 0
        %504 = vmatpush1.bf16.msra.mxu0 0
        %505 = vmatprep.subr.bf16.mxu0 0
        %506 = vmatpush1.bf16.msra.mxu0 0
        %507 = vmatprep.subr.bf16.mxu0 0
        %508 = vmatpush1.bf16.msra.mxu0 0
        %509 = vmatprep.subr.bf16.mxu0 0
        %510 = vmatpush1.bf16.msra.mxu0 0
        %511 = vmatprep.subr.bf16.mxu0 0
        %512 = vmatpush1.bf16.msra.mxu0 0
        %513 = vmatprep.subr.bf16.mxu0 0
        %514 = vmatpush1.bf16.msra.mxu0 0
        %515 = vmatprep.subr.bf16.mxu0 0
        %516 = vmatpush1.bf16.msra.mxu0 0
        %517 = vmatprep.mubr.bf16.mxu0 0
        %518 = vmatmul.mubr.bf16.gmra.mrb[0].mxu0 %v483
        %v519 = vpop.f32.mrb[0].mxu0
        %v520 = vadd.f32 0.0, %v519
        %v521 = vpop.f32.mrb[0].mxu0
        %v522 = vpop.f32.mrb[0].mxu0
        %v523 = vpop.f32.mrb[0].mxu0
        %524 = vdwg.mxu0
        %v525 = vadd.f32 %v480, %v520
        %v526 = vxor.u32 %v525, 2147483648
        %v527 = vmul.f32 %v526, 1.442695
        %v528 = vpow.pop %v527
        %v529 = vadd.f32 %v528, 1.0
        %v530 = vrcp.pop %v529
        %v531 = vmul.f32 1.0, %v530
        %v532 = vtanh.pop %v525
        %534 = vrot.lane.b32.xlu0 %v479, 32
        %v535 = vpop.permute.xlu0 %534
        %v537 = vmul.f32 %v531, %v535
        %539 = vrot.lane.b32.xlu0 %v532, 64
        %v540 = vpop.permute.xlu0 %539
        %v542 = vmul.f32 %v531, %v540
        %544 = vrot.lane.b32.xlu0 %v542, 32
        %v545 = vpop.permute.xlu0 %544
        %v547 = vadd.f32 %v537, %v545
        %v548 = vtanh.pop %v547
        %550 = vrot.lane.b32.xlu0 %v548, 64
        %v551 = vpop.permute.xlu0 %550
        %v553 = vmul.f32 %v531, %v551
        %555 = vrot.lane.b32.xlu0 %v553, 32
        %v556 = vpop.permute.xlu0 %555
        %558 = vst.msk [vmem:[%s332] sm:$0xff] %vm405, %v556
        %s559 = scalar_lea.vmem [#allocation5], 8
        %v560 = vld [vmem:[%s559] sm:$0xff]
        %v561 = vpack.c.bf16 %v553, %v553
        %563 = vrot.lane.b32.xlu0 %v561, 32
        %v564 = vpop.permute.xlu0 %563
        %v566 = vsel %vm405, %v564, 0
        %568 = vmatprep.subr.bf16.mxu0 0
        %569 = vmatpush1.bf16.msra.mxu0 %v476
        %570 = vmatprep.subr.bf16.mxu0 0
        %571 = vmatpush1.bf16.msra.mxu0 %v477
        %572 = vmatprep.subr.bf16.mxu0 0
        %573 = vmatpush1.bf16.msra.mxu0 0
        %574 = vmatprep.subr.bf16.mxu0 0
        %575 = vmatpush1.bf16.msra.mxu0 0
        %576 = vmatprep.subr.bf16.mxu0 0
        %577 = vmatpush1.bf16.msra.mxu0 0
        %578 = vmatprep.subr.bf16.mxu0 0
        %579 = vmatpush1.bf16.msra.mxu0 0
        %580 = vmatprep.subr.bf16.mxu0 0
        %581 = vmatpush1.bf16.msra.mxu0 0
        %582 = vmatprep.subr.bf16.mxu0 0
        %583 = vmatpush1.bf16.msra.mxu0 0
        %584 = vmatprep.subr.bf16.mxu0 0
        %585 = vmatpush1.bf16.msra.mxu0 0
        %586 = vmatprep.subr.bf16.mxu0 0
        %587 = vmatpush1.bf16.msra.mxu0 0
        %588 = vmatprep.subr.bf16.mxu0 0
        %589 = vmatpush1.bf16.msra.mxu0 0
        %590 = vmatprep.subr.bf16.mxu0 0
        %591 = vmatpush1.bf16.msra.mxu0 0
        %592 = vmatprep.subr.bf16.mxu0 0
        %593 = vmatpush1.bf16.msra.mxu0 0
        %594 = vmatprep.subr.bf16.mxu0 0
        %595 = vmatpush1.bf16.msra.mxu0 0
        %596 = vmatprep.subr.bf16.mxu0 0
        %597 = vmatpush1.bf16.msra.mxu0 0
        %598 = vmatprep.subr.bf16.mxu0 0
        %599 = vmatpush1.bf16.msra.mxu0 0
        %600 = vmatprep.mubr.bf16.mxu0 0
        %601 = vmatmul.mubr.bf16.gmra.mrb[0].mxu0 %v566
        %v602 = vpop.f32.mrb[0].mxu0
        %v603 = vadd.f32 0.0, %v602
        %v604 = vpop.f32.mrb[0].mxu0
        %v605 = vpop.f32.mrb[0].mxu0
        %v606 = vpop.f32.mrb[0].mxu0
        %607 = vdwg.mxu0
        %v608 = vadd.f32 %v560, %v603
        %v609 = vxor.u32 %v608, 2147483648
        %v610 = vmul.f32 %v609, 1.442695
        %v611 = vpow.pop %v610
        %v612 = vadd.f32 %v611, 1.0
        %v613 = vrcp.pop %v612
        %v614 = vmul.f32 1.0, %v613
        %v615 = vtanh.pop %v608
        %v616 = vmul.f32 %v614, %v547
        %618 = vrot.lane.b32.xlu0 %v615, 64
        %v619 = vpop.permute.xlu0 %618
        %v621 = vmul.f32 %v614, %v619
        %623 = vrot.lane.b32.xlu0 %v621, 32
        %v624 = vpop.permute.xlu0 %623
        %v626 = vadd.f32 %v616, %v624
        %v627 = vtanh.pop %v626
        %629 = vrot.lane.b32.xlu0 %v627, 64
        %v630 = vpop.permute.xlu0 %629
        %v632 = vmul.f32 %v614, %v630
        %634 = vrot.lane.b32.xlu0 %v632, 32
        %v635 = vpop.permute.xlu0 %634
        %s637 = scalar_lea.vmem %s332, 8 [#allocation14]
        %638 = vst.msk [vmem:[%s637] sm:$0xff] %vm405, %v635
        %s639 = scalar_lea.vmem [#allocation5], 16
        %v640 = vld [vmem:[%s639] sm:$0xff]
        %v641 = vpack.c.bf16 %v632, %v632
        %643 = vrot.lane.b32.xlu0 %v641, 32
        %v644 = vpop.permute.xlu0 %643
        %v646 = vsel %vm405, %v644, 0
        %648 = vmatprep.subr.bf16.mxu0 0
        %649 = vmatpush1.bf16.msra.mxu0 %v476
        %650 = vmatprep.subr.bf16.mxu0 0
        %651 = vmatpush1.bf16.msra.mxu0 %v477
        %652 = vmatprep.subr.bf16.mxu0 0
        %653 = vmatpush1.bf16.msra.mxu0 0
        %654 = vmatprep.subr.bf16.mxu0 0
        %655 = vmatpush1.bf16.msra.mxu0 0
        %656 = vmatprep.subr.bf16.mxu0 0
        %657 = vmatpush1.bf16.msra.mxu0 0
        %658 = vmatprep.subr.bf16.mxu0 0
        %659 = vmatpush1.bf16.msra.mxu0 0
        %660 = vmatprep.subr.bf16.mxu0 0
        %661 = vmatpush1.bf16.msra.mxu0 0
        %662 = vmatprep.subr.bf16.mxu0 0
        %663 = vmatpush1.bf16.msra.mxu0 0
        %664 = vmatprep.subr.bf16.mxu0 0
        %665 = vmatpush1.bf16.msra.mxu0 0
        %666 = vmatprep.subr.bf16.mxu0 0
        %667 = vmatpush1.bf16.msra.mxu0 0
        %668 = vmatprep.subr.bf16.mxu0 0
        %669 = vmatpush1.bf16.msra.mxu0 0
        %670 = vmatprep.subr.bf16.mxu0 0
        %671 = vmatpush1.bf16.msra.mxu0 0
        %672 = vmatprep.subr.bf16.mxu0 0
        %673 = vmatpush1.bf16.msra.mxu0 0
        %674 = vmatprep.subr.bf16.mxu0 0
        %675 = vmatpush1.bf16.msra.mxu0 0
        %676 = vmatprep.subr.bf16.mxu0 0
        %677 = vmatpush1.bf16.msra.mxu0 0
        %678 = vmatprep.subr.bf16.mxu0 0
        %679 = vmatpush1.bf16.msra.mxu0 0
        %680 = vmatprep.mubr.bf16.mxu0 0
        %681 = vmatmul.mubr.bf16.gmra.mrb[0].mxu0 %v646
        %v682 = vpop.f32.mrb[0].mxu0
        %v683 = vadd.f32 0.0, %v682
        %v684 = vpop.f32.mrb[0].mxu0
        %v685 = vpop.f32.mrb[0].mxu0
        %v686 = vpop.f32.mrb[0].mxu0
        %687 = vdwg.mxu0
        %v688 = vadd.f32 %v640, %v683
        %v689 = vxor.u32 %v688, 2147483648
        %v690 = vmul.f32 %v689, 1.442695
        %v691 = vpow.pop %v690
        %v692 = vadd.f32 %v691, 1.0
        %v693 = vrcp.pop %v692
        %v694 = vmul.f32 1.0, %v693
        %v695 = vtanh.pop %v688
        %v696 = vmul.f32 %v694, %v626
        %698 = vrot.lane.b32.xlu0 %v695, 64
        %v699 = vpop.permute.xlu0 %698
        %v701 = vmul.f32 %v694, %v699
        %703 = vrot.lane.b32.xlu0 %v701, 32
        %v704 = vpop.permute.xlu0 %703
        %v706 = vadd.f32 %v696, %v704
        %v707 = vtanh.pop %v706
        %709 = vrot.lane.b32.xlu0 %v707, 64
        %v710 = vpop.permute.xlu0 %709
        %v712 = vmul.f32 %v694, %v710
        %714 = vrot.lane.b32.xlu0 %v712, 32
        %v715 = vpop.permute.xlu0 %714
        %s717 = scalar_lea.vmem %s332, 16 [#allocation14]
        %718 = vst.msk [vmem:[%s717] sm:$0xff] %vm405, %v715
        %s719 = scalar_lea.vmem [#allocation5], 24
        %v720 = vld [vmem:[%s719] sm:$0xff]
        %v721 = vpack.c.bf16 %v712, %v712
        %723 = vrot.lane.b32.xlu0 %v721, 32
        %v724 = vpop.permute.xlu0 %723
        %v726 = vsel %vm405, %v724, 0
        %728 = vmatprep.subr.bf16.mxu0 0
        %729 = vmatpush1.bf16.msra.mxu0 %v476
        %730 = vmatprep.subr.bf16.mxu0 0
        %731 = vmatpush1.bf16.msra.mxu0 %v477
        %732 = vmatprep.subr.bf16.mxu0 0
        %733 = vmatpush1.bf16.msra.mxu0 0
        %734 = vmatprep.subr.bf16.mxu0 0
        %735 = vmatpush1.bf16.msra.mxu0 0
        %736 = vmatprep.subr.bf16.mxu0 0
        %737 = vmatpush1.bf16.msra.mxu0 0
        %738 = vmatprep.subr.bf16.mxu0 0
        %739 = vmatpush1.bf16.msra.mxu0 0
        %740 = vmatprep.subr.bf16.mxu0 0
        %741 = vmatpush1.bf16.msra.mxu0 0
        %742 = vmatprep.subr.bf16.mxu0 0
        %743 = vmatpush1.bf16.msra.mxu0 0
        %744 = vmatprep.subr.bf16.mxu0 0
        %745 = vmatpush1.bf16.msra.mxu0 0
        %746 = vmatprep.subr.bf16.mxu0 0
        %747 = vmatpush1.bf16.msra.mxu0 0
        %748 = vmatprep.subr.bf16.mxu0 0
        %749 = vmatpush1.bf16.msra.mxu0 0
        %750 = vmatprep.subr.bf16.mxu0 0
        %751 = vmatpush1.bf16.msra.mxu0 0
        %752 = vmatprep.subr.bf16.mxu0 0
        %753 = vmatpush1.bf16.msra.mxu0 0
        %754 = vmatprep.subr.bf16.mxu0 0
        %755 = vmatpush1.bf16.msra.mxu0 0
        %756 = vmatprep.subr.bf16.mxu0 0
        %757 = vmatpush1.bf16.msra.mxu0 0
        %758 = vmatprep.subr.bf16.mxu0 0
        %759 = vmatpush1.bf16.msra.mxu0 0
        %760 = vmatprep.mubr.bf16.mxu0 0
        %761 = vmatmul.mubr.bf16.gmra.mrb[0].mxu0 %v726
        %v762 = vpop.f32.mrb[0].mxu0
        %v763 = vadd.f32 0.0, %v762
        %v764 = vpop.f32.mrb[0].mxu0
        %v765 = vpop.f32.mrb[0].mxu0
        %v766 = vpop.f32.mrb[0].mxu0
        %767 = vdwg.mxu0
        %v768 = vadd.f32 %v720, %v763
        %v769 = vxor.u32 %v768, 2147483648
        %v770 = vmul.f32 %v769, 1.442695
        %v771 = vpow.pop %v770
        %v772 = vadd.f32 %v771, 1.0
        %v773 = vrcp.pop %v772
        %v774 = vmul.f32 1.0, %v773
        %v775 = vtanh.pop %v768
        %v776 = vmul.f32 %v774, %v706
        %778 = vrot.lane.b32.xlu0 %v775, 64
        %v779 = vpop.permute.xlu0 %778
        %v781 = vmul.f32 %v774, %v779
        %783 = vrot.lane.b32.xlu0 %v781, 32
        %v784 = vpop.permute.xlu0 %783
        %v786 = vadd.f32 %v776, %v784
        %v787 = vtanh.pop %v786
        %789 = vrot.lane.b32.xlu0 %v787, 64
        %v790 = vpop.permute.xlu0 %789
        %v792 = vmul.f32 %v774, %v790
        %794 = vrot.lane.b32.xlu0 %v792, 32
        %v795 = vpop.permute.xlu0 %794
        %s797 = scalar_lea.vmem %s332, 24 [#allocation14]
        %798 = vst.msk [vmem:[%s797] sm:$0xff] %vm405, %v795
        %799 = vst.msk [vmem:[#allocation2] sm:$0xff] %vm405, %v795
        %801 = vrot.lane.b32.xlu0 %v786, 96
        %v802 = vpop.permute.xlu0 %801
        %804 = vst.msk [vmem:[#allocation3] sm:$0xff] %vm405, %v802
        %p805 = scmp.eq.s32.totalorder %s28, 1
        // Predicated region
        $region61: #{tpu_custom_call.1} parent=39 // pred_check
          %p806 = pneg %p805
        $region62: #{tpu_custom_call.1} parent=39 // pred_check_branch
          %808 = sbr.rel (%p806) target = $region64
        $region63: #{tpu_custom_call.1} parent=39 // pred_region
          %809 = vst.msk [vmem:[#allocation15] sm:$0xff] %vm405, %v795
          %810 = vst.msk [vmem:[#allocation17] sm:$0xff] %vm405, %v802
        $region64: #{tpu_custom_call.1} parent=39 // pred_fallthru
          _
        %s811 = sand.u32 %s146, 1
        %s812 = scalar_lea.sflag [#allocation8], %s811
        %s813 = sand.u32 %s146, 1
        %s814 = smul.addr %s813, 32
        %s815 = scalar_lea.vmem [#allocation14], %s814
        // Predicated region
        $region65: #{tpu_custom_call.1} parent=39 // pred_check
          %p816 = pneg %p156
        $region66: #{tpu_custom_call.1} parent=39 // pred_check_branch
          %818 = sbr.rel (%p816) target = $region68
        $region67: #{tpu_custom_call.1} parent=39 // pred_region
          %s819 = smul.u32 4, %s28
          %s821 = ssub.s32 512, 512
          %822 = vsyncadd %s812, %s821
          %s823 = smul.addr %s819, 128
          %s824 = scalar_lea.hbm %s5, %s823
          %s825 = sshll.u32 %s815, 4
          %s826 = int_to_ptr.vmem [resolvable:$true] %s825
          %831 = dma.vmem_to_hbm [thread:$0]  %s826, 512, %s824, %s812, 128, 128, 8
        $region68: #{tpu_custom_call.1} parent=39 // pred_fallthru
          _
        // Predicated region
        $region69: #{tpu_custom_call.1} parent=39 // pred_check
          %p832 = pneg %p177
        $region70: #{tpu_custom_call.1} parent=39 // pred_check_branch
          %834 = sbr.rel (%p832) target = $region72
        $region71: #{tpu_custom_call.1} parent=39 // pred_region
          %s836 = ssub.s32 128, 128
          %837 = vsyncadd [#allocation16], %s836
          %s839 = sshll.u32 [#allocation15], 4
          %s840 = int_to_ptr.vmem [resolvable:$true] %s839
          %842 = dma.vmem_to_hbm [thread:$0]  %s840, 128, %s6, [#allocation16]
        $region72: #{tpu_custom_call.1} parent=39 // pred_fallthru
          _
        // Predicated region
        $region73: #{tpu_custom_call.1} parent=39 // pred_check
          %p843 = pneg %p198
        $region74: #{tpu_custom_call.1} parent=39 // pred_check_branch
          %845 = sbr.rel (%p843) target = $region76
        $region75: #{tpu_custom_call.1} parent=39 // pred_region
          %s847 = ssub.s32 128, 128
          %848 = vsyncadd [#allocation16], %s847
          %s850 = sshll.u32 [#allocation17], 4
          %s851 = int_to_ptr.vmem [resolvable:$true] %s850
          %853 = dma.vmem_to_hbm [thread:$0]  %s851, 128, %s7, [#allocation16]
        $region76: #{tpu_custom_call.1} parent=39 // pred_fallthru
          _
        // Predicated region
        $region77: #{tpu_custom_call.1} parent=39 // pred_check
          %p854 = pneg %p177
        $region78: #{tpu_custom_call.1} parent=39 // pred_check_branch
          %856 = sbr.rel (%p854) target = $region80
        $region79: #{tpu_custom_call.1} parent=39 // pred_region
          %857 = dma.done [#allocation16], 128
        $region80: #{tpu_custom_call.1} parent=39 // pred_fallthru
          _
        // Predicated region
        $region81: #{tpu_custom_call.1} parent=39 // pred_check
          %p858 = pneg %p198
        $region82: #{tpu_custom_call.1} parent=39 // pred_check_branch
          %860 = sbr.rel (%p858) target = $region84
        $region83: #{tpu_custom_call.1} parent=39 // pred_region
          %861 = dma.done [#allocation16], 128
        $region84: #{tpu_custom_call.1} parent=39 // pred_fallthru
          _
      $region40: #{tpu_custom_call.1} parent=5 // pred_fallthru
        _
      %p862 = scmp.le.s32.totalorder 2, %s23
      // Predicated region
      $region85: #{tpu_custom_call.1} parent=5 // pred_check
        %p863 = pneg %p862
      $region86: #{tpu_custom_call.1} parent=5 // pred_check_branch
        %865 = sbr.rel (%p863) target = $region88
      $region87: #{tpu_custom_call.1} parent=5 // pred_region
        %s866 = ssub.s32 %s23, 2
        // Predicated region
        $region89: #{tpu_custom_call.1} parent=87 // pred_check
          %p867 = pneg %p162
        $region90: #{tpu_custom_call.1} parent=87 // pred_check_branch
          %869 = sbr.rel (%p867) target = $region92
        $region91: #{tpu_custom_call.1} parent=87 // pred_region
          %s870 = sand.u32 %s147, 1
          %s871 = scalar_lea.sflag [#allocation8], %s870
          %s872 = sand.u32 %s147, 1
          %s873 = smul.addr %s872, 32
          %s874 = scalar_lea.vmem [#allocation14], %s873
          %875 = dma.done %s871, 512
        $region92: #{tpu_custom_call.1} parent=87 // pred_fallthru
          _
      $region88: #{tpu_custom_call.1} parent=5 // pred_fallthru
        _
    $region6: #{tpu_custom_call.1} parent=1 // loop_footer
      %s27 = sadd.s32 1, %s23
    $region7: #{tpu_custom_call.1} parent=1 // loop_footer_branch
      %22 = sbr.rel target = $region3
    $region8: #{tpu_custom_call.1} parent=1 // loop_exit
      _
    %876 = vsyncpa [#allocation7], 1
    %s877 = scalar_lea.sflag [#allocation7], 1
    %878 = vsyncpa %s877, 1
    %879 = vsyncpa [#allocation10], 1
    %880 = vsyncpa [#allocation13], 1
    %881 = vsyncpa [#allocation8], 1
    %s882 = scalar_lea.sflag [#allocation8], 1
    %883 = vsyncpa %s882, 1
    %884 = vsyncpa [#allocation16], 1

</llo_original>
